<compile_context>
chip_gen: v5e
topology: v5e:2x2
jax: 0.10.0
libtpu: 0.0.40
codegen_flags: <defaults>
</compile_context>

<pallas_src>
import functools
import math

import jax
import jax.numpy as jnp
from jax.experimental import pallas as pl
from jax.experimental.pallas import tpu as pltpu

_LANES = 128
_TARGET_BLOCK_BYTES = 4 * 1024 * 1024     # ~4 MiB per block (v7x-VMEM safe)
_MIN_GRID_SPLITS = 4                      # keep >=4 blocks for v7x TC sharding
_RAGGED_BLOCK_LANES = 128 * 1024          # ragged path: lanes per (1, L) block
_VMEM_LIMIT_BYTES = 48 * 1024 * 1024
_SUBLANE_MULT = {4: 8, 2: 16, 1: 32}      # sublane packing per element width


def _radian_kernel(x_ref, o_ref, *, compute_dtype):
    pi = jnp.asarray(math.pi, compute_dtype)
    two_pi = jnp.asarray(2.0 * math.pi, compute_dtype)
    inv_two_pi = jnp.asarray(1.0 / (2.0 * math.pi), compute_dtype)
    t = x_ref[...].astype(compute_dtype) + pi
    # Positive-constant floor-mod == torch.remainder(t, 2*pi): no divide, no
    # sign fixup (the divisor is a known-positive constant).
    wrapped = t - jnp.floor(t * inv_two_pi) * two_pi
    o_ref[...] = (wrapped - pi).astype(o_ref.dtype)


def _cdiv(a: int, b: int) -> int:
    return -(-a // b)


def _round_up(a: int, b: int) -> int:
    return _cdiv(a, b) * b


def _pick_compute_dtype(dtype):
    # Native bf16/f32 compute (v6e/v7x VPUs execute bf16); upcast anything
    # else (e.g. fp16) to f32.  On v5e the kernel is memory-bound either way.
    if dtype == jnp.bfloat16 or dtype == jnp.float32:
        return dtype
    return jnp.float32


def radian_layer(x: jax.Array) -> jax.Array:
    """Wrap angles to [-pi, pi), elementwise.  Any shape, float dtype."""
    orig_shape = x.shape
    dtype = x.dtype
    n = int(x.size)
    if n == 0:
        return x
    itemsize = dtype.itemsize
    sub_mult = _SUBLANE_MULT.get(itemsize, 8)

    if n % _LANES == 0:
        # Common case: free reshape to a lane-dense (rows, 128) slab.
        rows = n // _LANES
        slab = x.reshape(rows, _LANES)
        bytes_rows = max(sub_mult, _TARGET_BLOCK_BYTES // (_LANES * itemsize))
        split_rows = _round_up(_cdiv(rows, _MIN_GRID_SPLITS), sub_mult)
        row_tile = max(sub_mult, min(bytes_rows, split_rows))
        grid = (_cdiv(rows, row_tile),)
        block_shape = (row_tile, _LANES)
        index_map = lambda i: (i, 0)
    else:
        # Ragged numel: (1, n) slab, grid over the lane axis; the final block
        # is partially masked by Pallas.  No jnp.pad / trailing slice copies.
        slab = x.reshape(1, n)
        block_lanes = min(_RAGGED_BLOCK_LANES, _round_up(n, _LANES))
        grid = (_cdiv(n, block_lanes),)
        block_shape = (1, block_lanes)
        index_map = lambda i: (0, i)

    kernel = functools.partial(_radian_kernel,
                               compute_dtype=_pick_compute_dtype(dtype))
    out = pl.pallas_call(
        kernel,
        out_shape=jax.ShapeDtypeStruct(slab.shape, dtype),
        grid_spec=pltpu.PrefetchScalarGridSpec(
            num_scalar_prefetch=0,
            grid=grid,
            in_specs=[pl.BlockSpec(block_shape, index_map)],
            out_specs=pl.BlockSpec(block_shape, index_map),
        ),
        compiler_params=pltpu.CompilerParams(
            dimension_semantics=("parallel",),
            vmem_limit_bytes=_VMEM_LIMIT_BYTES,
        ),
        cost_estimate=pl.CostEstimate(
            flops=6 * n,
            transcendentals=0,
            bytes_accessed=2 * n * itemsize,
        ),
    )(slab)
    return out.reshape(orig_shape)


if __name__ == "__main__":
    two_pi = 2.0 * math.pi

    def wrap_diff(a, b):
        # |a - b| up to an exact 2*pi wrap (FP boundary cases can legitimately
        # land on the other side of the [-pi, pi) interval).
        d = jnp.abs(a.astype(jnp.float32) - b.astype(jnp.float32))
        return jnp.minimum(d, jnp.abs(d - two_pi))

    key = jax.random.PRNGKey(0)
    # NCHW-like input, values well outside [-pi, pi) so wrapping is exercised.
    x = jax.random.normal(key, (2, 4, 16, 16), dtype=jnp.float32) * 10.0
    y = jax.block_until_ready(radian_layer(x))
    y_ref = jnp.mod(x + math.pi, two_pi) - math.pi   # torch.remainder semantics
    assert y.shape == x.shape and y.dtype == x.dtype
    assert bool(jnp.all(wrap_diff(y, y_ref) < 1e-4)), "f32 mismatch vs reference"
    assert bool(jnp.all(y >= -math.pi - 1e-3)) and bool(jnp.all(y <= math.pi + 1e-3))

    # bf16 path: native bf16 compute + ragged (numel % 128 != 0) path.
    # bf16-native remainder carries a few ulps of |x + pi| of error (exactly
    # as torch's own bf16 forward does), hence the looser tolerances.
    xb = (jax.random.normal(jax.random.PRNGKey(1), (3, 5, 7, 11)) * 3.0).astype(jnp.bfloat16)
    yb = jax.block_until_ready(radian_layer(xb))
    yb_ref = jnp.mod(xb.astype(jnp.float32) + math.pi, two_pi) - math.pi
    assert yb.shape == xb.shape and yb.dtype == xb.dtype
    assert bool(jnp.all(wrap_diff(yb, yb_ref) < 0.35)), "bf16 mismatch vs reference"
    yb32 = yb.astype(jnp.float32)
    assert bool(jnp.all(yb32 >= -math.pi - 0.35)) and bool(jnp.all(yb32 <= math.pi + 0.35))

    print("KERNEL_OK")
</pallas_src>

<mosaic_0001>
module attributes {stable_mosaic.version = 11 : i64} {
  func.func @_radian_kernel(%arg0: i32, %arg1: memref<8x128xf32, #tpu.memory_space<vmem>>, %arg2: memref<8x128xf32, #tpu.memory_space<vmem>>) attributes {dimension_semantics = [#tpu.dimension_semantics<parallel>], iteration_bounds = array<i64: 2>, scalar_prefetch = 0 : i64, scratch_operands = 0 : i64, tpu.core_type = #tpu.core_type<tc>, window_params = [{transform_indices = @transform_0, window_bounds = array<i64: 8, 128>}, {transform_indices = @transform_1, window_bounds = array<i64: 8, 128>}]} {
    %c0 = arith.constant 0 : index
    %c0_0 = arith.constant 0 : index
    %0 = vector.load %arg1[%c0, %c0_0] : memref<8x128xf32, #tpu.memory_space<vmem>>, vector<8x128xf32>
    %cst = arith.constant 3.14159274 : f32
    %1 = vector.broadcast %cst : f32 to vector<8x128xf32>
    %2 = arith.addf %0, %1 : vector<8x128xf32>
    %cst_1 = arith.constant 0.159154937 : f32
    %3 = vector.broadcast %cst_1 : f32 to vector<8x128xf32>
    %4 = arith.mulf %2, %3 : vector<8x128xf32>
    %5 = math.floor %4 : vector<8x128xf32>
    %cst_2 = arith.constant 6.28318548 : f32
    %6 = vector.broadcast %cst_2 : f32 to vector<8x128xf32>
    %7 = arith.mulf %5, %6 : vector<8x128xf32>
    %8 = arith.subf %2, %7 : vector<8x128xf32>
    %cst_3 = arith.constant 3.14159274 : f32
    %9 = vector.broadcast %cst_3 : f32 to vector<8x128xf32>
    %10 = arith.subf %8, %9 : vector<8x128xf32>
    %c0_4 = arith.constant 0 : index
    %c0_5 = arith.constant 0 : index
    %11 = vector.load %arg2[%c0_4, %c0_5] : memref<8x128xf32, #tpu.memory_space<vmem>>, vector<8x128xf32>
    tpu.vector_store %arg2[%c0_4, %c0_5], %10 {strides = array<i32>} : memref<8x128xf32, #tpu.memory_space<vmem>>, vector<8x128xf32>,
    return
  }
  func.func @transform_0(%arg0: i32) -> (i32, i32) {
    %c0_i32 = arith.constant 0 : i32
    %c0_i32_0 = arith.constant 0 : i32
    return %arg0, %c0_i32 : i32, i32
  }
  func.func @transform_1(%arg0: i32) -> (i32, i32) {
    %c0_i32 = arith.constant 0 : i32
    %c0_i32_0 = arith.constant 0 : i32
    return %arg0, %c0_i32 : i32, i32
  }
}

</mosaic_0001>

<llo_original>
// kernel: tpu_custom_call.1
$region0: #{tpu_custom_call.1}
  #allocation0 [shape = 'u32[]', space=smem, size = 0x4, offset = 0x4, fixed_abs, tag = 'smem constant byte address 0x4 - core index']
  #allocation1 [shape = 'u32[72,128]{1,0:T(1,128)}', space=vmem, size = 0x9000, scoped, tag = 'internal scratch']
  %s0 = inlined_call_operand.hbm [shape: f32[16,128], index: 0, kind: input, shape index: {}]
  %s1 = inlined_call_operand.hbm [shape: f32[16,128], index: 1, kind: output, shape index: {}]
  %s2 = sld [smem:[#allocation0]]
  $region41: #{tpu_custom_call.1} parent=0
    _
  %s4 = ssub.s32 1, %s2
  %s5 = scalar_select 0, %s4, %s2
  $region1: #{tpu_custom_call.1} parent=0
    #allocation2 [shape = 'u8[8192]{0}', space=vmem, size = 0x2000, scoped, tag = 'input window, operand 0']
    #allocation3 [shape = 's32[2]{0}', space=sflag, size = 0x8, scoped, tag = 'scoped memory for tpu_custom_call.1']
    #allocation4 [shape = 's32[2]{0}', space=sflag, size = 0x8, scoped, tag = 'scoped memory for tpu_custom_call.1']
    #allocation5 [shape = 'u8[8192]{0}', space=vmem, size = 0x2000, scoped, tag = 'output window, operand 0']
    %6 = vsyncpa [#allocation3], 0
    %s7 = scalar_lea.sflag [#allocation3], 1
    %8 = vsyncpa %s7, 0
    %9 = vsyncpa [#allocation4], 0
    %s10 = scalar_lea.sflag [#allocation4], 1
    %11 = vsyncpa %s10, 0
    loop: start=0, step=1, limit=4
    $region2: #{tpu_custom_call.1} parent=1 // loop_pre_header
      _
    $region3: #{tpu_custom_call.1} parent=1 // loop_header
      %s13 = sphi 0, %s17
      %p14 = scmp.ge.s32.totalorder %s13, 4
      %s23 = sphi 0, %s25
      %s26 = sphi 0, %s23
      %s27 = sphi 0, %s26
      %s43 = sphi 0, %s27
      %s49 = sphi 0, %s51
      %s52 = sphi 0, %s49
      %s53 = sphi 0, %s52
      %s69 = sphi 0, %s53
    $region4: #{tpu_custom_call.1} parent=1 // loop_header_branch
      %16 = sbr.rel (%p14) target = $region8
    $region5: #{tpu_custom_call.1} parent=1 // loop_body
      %s18 = ssub.s32 %s13, 1
      %s19 = ssub.s32 %s13, 2
      %s20 = sadd.s32 %s13, 1
      %s21 = ssub.s32 %s13, %s20
      %p22 = scmp.eq.s32.totalorder %s21, 0
      %s24 = sadd.s32 %s23, 1
      %s25 = scalar_select %p22, %s23, %s24
      %p28 = pneg %p22
      %p29 = scmp.eq.s32.totalorder %s13, 1
      %p30 = por %p28, %p29
      %p31 = scmp.ne.s32.totalorder %s23, %s26
      %p32 = scmp.eq.s32.totalorder %s13, 0
      %p33 = por %p31, %p32
      %p34 = scmp.ne.s32.totalorder %s23, %s26
      %p35 = scmp.eq.s32.totalorder %s18, 1
      %p36 = por %p34, %p35
      %p37 = scmp.ne.s32.totalorder %s26, %s27
      %p38 = scmp.eq.s32.totalorder %s18, 0
      %p39 = por %p37, %p38
      %p40 = scmp.ne.s32.totalorder %s26, %s27
      %p41 = scmp.eq.s32.totalorder %s19, 1
      %p42 = por %p40, %p41
      %p44 = scmp.ne.s32.totalorder %s27, %s43
      %p45 = scmp.eq.s32.totalorder %s19, 0
      %p46 = por %p44, %p45
      %s47 = ssub.s32 %s13, %s20
      %p48 = scmp.eq.s32.totalorder %s47, 0
      %s50 = sadd.s32 %s49, 1
      %s51 = scalar_select %p48, %s49, %s50
      %p54 = pneg %p48
      %p55 = scmp.eq.s32.totalorder %s13, 1
      %p56 = por %p54, %p55
      %p57 = scmp.ne.s32.totalorder %s49, %s52
      %p58 = scmp.eq.s32.totalorder %s13, 0
      %p59 = por %p57, %p58
      %p60 = scmp.ne.s32.totalorder %s49, %s52
      %p61 = scmp.eq.s32.totalorder %s18, 1
      %p62 = por %p60, %p61
      %p63 = scmp.ne.s32.totalorder %s52, %s53
      %p64 = scmp.eq.s32.totalorder %s18, 0
      %p65 = por %p63, %p64
      %p66 = scmp.ne.s32.totalorder %s52, %s53
      %p67 = scmp.eq.s32.totalorder %s19, 1
      %p68 = por %p66, %p67
      %p70 = scmp.ne.s32.totalorder %s53, %s69
      %p71 = scmp.eq.s32.totalorder %s19, 0
      %p72 = por %p70, %p71
      %p73 = scmp.le.s32.totalorder 1, %s13
      %p74 = scmp.lt.s32.totalorder %s13, 3
      %p75 = pnand %p73, %p74
      %p76 = pneg %p75
      // Predicated region
      $region9: #{tpu_custom_call.1} parent=5 // pred_check
        _
      $region10: #{tpu_custom_call.1} parent=5 // pred_check_branch
        %78 = sbr.rel (%p75) target = $region12
      $region11: #{tpu_custom_call.1} parent=5 // pred_region
        %s79 = ssub.s32 %s13, 1
      $region12: #{tpu_custom_call.1} parent=5 // pred_fallthru
        _
      %p80 = scmp.lt.s32.totalorder %s13, 2
      // Predicated region
      $region13: #{tpu_custom_call.1} parent=5 // pred_check
        %p81 = pneg %p80
      $region14: #{tpu_custom_call.1} parent=5 // pred_check_branch
        %83 = sbr.rel (%p81) target = $region16
      $region15: #{tpu_custom_call.1} parent=5 // pred_region
        // Predicated region
        $region17: #{tpu_custom_call.1} parent=15 // pred_check
          %p84 = pneg %p33
        $region18: #{tpu_custom_call.1} parent=15 // pred_check_branch
          %86 = sbr.rel (%p84) target = $region20
        $region19: #{tpu_custom_call.1} parent=15 // pred_region
          %s87 = sand.u32 %s23, 1
          %s88 = scalar_lea.sflag [#allocation3], %s87
          %s89 = sand.u32 %s23, 1
          %s90 = smul.addr %s89, 8
          %s91 = scalar_lea.vmem [#allocation2], %s90
          %93 = vsyncadd %s88, 0
          %s94 = smul.addr %s13, 8
          %s95 = scalar_lea.hbm %s0, %s94
          %s97 = sshll.u32 %s95, 4
          %s98 = int_to_ptr.hbm [resolvable:$true] %s97
          %s99 = sshll.u32 %s91, 4
          %s100 = int_to_ptr.vmem [resolvable:$true] %s99
          %102 = dma.hbm_to_vmem [thread:$0]  %s98, 128, %s100, %s88
        $region20: #{tpu_custom_call.1} parent=15 // pred_fallthru
          _
      $region16: #{tpu_custom_call.1} parent=5 // pred_fallthru
        _
      %p103 = scmp.le.s32.totalorder 1, %s13
      %p104 = scmp.lt.s32.totalorder %s13, 3
      %p105 = pnand %p103, %p104
      %p106 = pneg %p105
      // Predicated region
      $region21: #{tpu_custom_call.1} parent=5 // pred_check
        _
      $region22: #{tpu_custom_call.1} parent=5 // pred_check_branch
        %108 = sbr.rel (%p105) target = $region24
      $region23: #{tpu_custom_call.1} parent=5 // pred_region
        %s109 = ssub.s32 %s13, 1
        %s110 = sand.u32 %s26, 1
        %s111 = scalar_lea.sflag [#allocation3], %s110
        %s112 = sand.u32 %s26, 1
        %s113 = smul.addr %s112, 8
        %s114 = scalar_lea.vmem [#allocation2], %s113
        // Predicated region
        $region25: #{tpu_custom_call.1} parent=23 // pred_check
          %p115 = pneg %p39
        $region26: #{tpu_custom_call.1} parent=23 // pred_check_branch
          %117 = sbr.rel (%p115) target = $region28
        $region27: #{tpu_custom_call.1} parent=23 // pred_region
          %119 = dma.done %s111, 128
        $region28: #{tpu_custom_call.1} parent=23 // pred_fallthru
          _
        %s120 = sand.u32 %s26, 1
        %s121 = scalar_lea.sflag [#allocation3], %s120
        %s122 = sand.u32 %s26, 1
        %s123 = smul.addr %s122, 8
        %s124 = scalar_lea.vmem [#allocation2], %s123
        %p125 = pneg %p39
        %p126 = pneg %p36
        %p127 = pneg %p65
        %p128 = pneg %p62
        %s129 = sand.u32 %s52, 1
        %s130 = scalar_lea.sflag [#allocation4], %s129
        %s131 = sand.u32 %s52, 1
        %s132 = smul.addr %s131, 8
        %s133 = scalar_lea.vmem [#allocation5], %s132
        %v134 = vld [vmem:[%s114] sm:$0xff]
        %v135 = vadd.f32 %v134, 3.1415927
        %v136 = vmul.f32 %v135, 0.15915494
        %v137 = vfloor.f32 %v136
        %v138 = vmul.f32 %v137, 6.2831855
        %v139 = vsub.f32 %v135, %v138
        %v140 = vsub.f32 %v139, 3.1415927
        %141 = vst [vmem:[%s133] sm:$0xff] %v140
        %s142 = sand.u32 %s52, 1
        %s143 = scalar_lea.sflag [#allocation4], %s142
        %s144 = sand.u32 %s52, 1
        %s145 = smul.addr %s144, 8
        %s146 = scalar_lea.vmem [#allocation5], %s145
        // Predicated region
        $region29: #{tpu_custom_call.1} parent=23 // pred_check
          %p147 = pneg %p62
        $region30: #{tpu_custom_call.1} parent=23 // pred_check_branch
          %149 = sbr.rel (%p147) target = $region32
        $region31: #{tpu_custom_call.1} parent=23 // pred_region
          %151 = vsyncadd %s143, 0
          %s152 = smul.addr %s18, 8
          %s153 = scalar_lea.hbm %s1, %s152
          %s155 = sshll.u32 %s146, 4
          %s156 = int_to_ptr.vmem [resolvable:$true] %s155
          %s157 = sshll.u32 %s153, 4
          %s158 = int_to_ptr.hbm [resolvable:$true] %s157
          %160 = dma.vmem_to_hbm [thread:$0]  %s156, 128, %s158, %s143
        $region32: #{tpu_custom_call.1} parent=23 // pred_fallthru
          _
      $region24: #{tpu_custom_call.1} parent=5 // pred_fallthru
        _
      %p161 = scmp.le.s32.totalorder 2, %s13
      // Predicated region
      $region33: #{tpu_custom_call.1} parent=5 // pred_check
        %p162 = pneg %p161
      $region34: #{tpu_custom_call.1} parent=5 // pred_check_branch
        %164 = sbr.rel (%p162) target = $region36
      $region35: #{tpu_custom_call.1} parent=5 // pred_region
        %s165 = ssub.s32 %s13, 2
        // Predicated region
        $region37: #{tpu_custom_call.1} parent=35 // pred_check
          %p166 = pneg %p68
        $region38: #{tpu_custom_call.1} parent=35 // pred_check_branch
          %168 = sbr.rel (%p166) target = $region40
        $region39: #{tpu_custom_call.1} parent=35 // pred_region
          %s169 = sand.u32 %s53, 1
          %s170 = scalar_lea.sflag [#allocation4], %s169
          %s171 = sand.u32 %s53, 1
          %s172 = smul.addr %s171, 8
          %s173 = scalar_lea.vmem [#allocation5], %s172
          %175 = dma.done %s170, 128
        $region40: #{tpu_custom_call.1} parent=35 // pred_fallthru
          _
      $region36: #{tpu_custom_call.1} parent=5 // pred_fallthru
        _
    $region6: #{tpu_custom_call.1} parent=1 // loop_footer
      %s17 = sadd.s32 1, %s13
    $region7: #{tpu_custom_call.1} parent=1 // loop_footer_branch
      %12 = sbr.rel target = $region3
    $region8: #{tpu_custom_call.1} parent=1 // loop_exit
      _
    %176 = vsyncpa [#allocation3], 1
    %s177 = scalar_lea.sflag [#allocation3], 1
    %178 = vsyncpa %s177, 1
    %179 = vsyncpa [#allocation4], 1
    %s180 = scalar_lea.sflag [#allocation4], 1
    %181 = vsyncpa %s180, 1

</llo_original>
